<compile_context>
chip_gen: v7x
topology: tpu7x:2x2x1
jax: 0.10.0
libtpu: 0.0.40
codegen_flags: <defaults>
</compile_context>

<pallas_src>
import functools

import jax
import jax.numpy as jnp
from jax.experimental import pallas as pl
from jax.experimental.pallas import tpu as pltpu


def _dino_neg_loss_kernel(onl_ref, tgt_ref, out_ref, *, n, inv_temp):
    """One grid step = one student chunk vs. BOTH teacher chunks."""
    p = pl.program_id(0)                      # student chunk id v

    onl = onl_ref[...]                        # (N, Dp), native dtype
    tgt = tgt_ref[...]                        # (2N, Dp), native dtype

    # Scores against both teacher chunks in a single MXU pass; contraction over
    # the last dim of both operands, no transposed copy of the teacher block.
    s = jax.lax.dot_general(
        onl, tgt,
        dimension_numbers=(((1,), (1,)), ((), ())),
        preferred_element_type=jnp.float32,
    ) * inv_temp                              # (N, 2N) f32

    onl_f = onl.astype(jnp.float32)
    tgt_f = tgt.astype(jnp.float32)

    def ce_term(iq):
        # CE with label 0 on [pos, neg]/T == logsumexp over the full row - diag.
        s_half = s[:, iq * n:(iq + 1) * n]                            # (N, N)
        row_max = jnp.max(s_half, axis=-1, keepdims=True)
        lse = row_max + jnp.log(
            jnp.sum(jnp.exp(s_half - row_max), axis=-1, keepdims=True))
        # diag(student_v @ teacher_iq.T) as a row-wise dot (no iota masks).
        diag = jnp.sum(onl_f * tgt_f[iq * n:(iq + 1) * n],
                       axis=-1, keepdims=True) * inv_temp             # (N, 1)
        return jnp.mean(lse - diag)

    # Skip the v == iq pair, branch-free.
    inc0 = (p != 0).astype(jnp.float32)
    inc1 = (p != 1).astype(jnp.float32)
    partial = inc0 * ce_term(0) + inc1 * ce_term(1)

    # Lane-dense unmasked store of this step's partial sum of loss terms.
    out_ref[...] = jnp.broadcast_to(partial, out_ref.shape).astype(jnp.float32)


def dino_neg_loss(student_output, teacher_output, *, ncrops, temperature=0.1):
    total_s, d = student_output.shape
    total_t, d2 = teacher_output.shape
    assert d == d2
    n = total_t // 2
    assert total_s == ncrops * n and total_t == 2 * n
    assert ncrops >= 2

    # Sublane-packing constraint on the per-crop batch (8 for f32, 16 for bf16, ...).
    itemsize = jnp.dtype(student_output.dtype).itemsize
    sublane = 8 * max(1, 4 // itemsize)
    assert n % sublane == 0, f"per-crop batch {n} must be a multiple of {sublane}"

    # Pad the feature dim to the 128-lane axis so every block/DMA is lane-dense.
    # Zero padding changes neither the matmul nor the row-wise diagonal.
    d_pad = ((d + 127) // 128) * 128
    if d_pad != d:
        student_output = jnp.pad(student_output, ((0, 0), (0, d_pad - d)))
        teacher_output = jnp.pad(teacher_output, ((0, 0), (0, d_pad - d)))

    n_terms = 2 * (ncrops - 1)
    kernel = functools.partial(
        _dino_neg_loss_kernel, n=n, inv_temp=float(1.0 / temperature))

    grid_spec = pltpu.PrefetchScalarGridSpec(
        num_scalar_prefetch=0,
        grid=(ncrops,),
        in_specs=[
            # student_output: chunk v = grid index p -> block (N, Dp)
            pl.BlockSpec((n, d_pad), lambda p: (p, 0)),
            # teacher_output: full (2N, Dp) block, resident across steps
            pl.BlockSpec((2 * n, d_pad), lambda p: (0, 0)),
        ],
        # Distinct (8,128)-tiled output block per step -> axis can be parallel.
        out_specs=pl.BlockSpec((1, 8, 128), lambda p: (p, 0, 0)),
    )

    partials = pl.pallas_call(
        kernel,
        out_shape=jax.ShapeDtypeStruct((ncrops, 8, 128), jnp.float32),
        grid_spec=grid_spec,
        compiler_params=pltpu.CompilerParams(
            dimension_semantics=("parallel",),
        ),
    )(student_output, teacher_output)

    # Sum of per-term CE losses, then divide by n_loss_terms (as in PyTorch).
    return jnp.sum(partials[:, 0, 0]) / n_terms


def dino_neg_loss_ref(student_output, teacher_output, *, ncrops, temperature=0.1):
    """Pure-JAX reference mirroring the PyTorch code path."""
    n = teacher_output.shape[0] // 2
    student_chunks = jnp.split(student_output, ncrops, axis=0)
    teacher_chunks = jnp.split(teacher_output, 2, axis=0)
    total, terms = 0.0, 0
    for iq, q in enumerate(teacher_chunks):
        for v in range(ncrops):
            if v == iq:
                continue
            s = student_chunks[v] @ q.T
            pos = jnp.diag(s)[:, None]
            mask = 1 - jnp.eye(n, dtype=jnp.int32)
            neg = s[mask == 1].reshape(n, n - 1)
            logits = jnp.concatenate([pos, neg], axis=1) / temperature
            ce = jnp.mean(jax.nn.logsumexp(logits, axis=1) - logits[:, 0])
            total = total + ce
            terms += 1
    return total / terms


if __name__ == "__main__":
    NCROPS = 4        # 2 global + 2 local crops
    N = 8             # per-crop batch size
    D = 32            # projection dim
    TEMPERATURE = 0.1  # neg_head = ContrastiveHead(temperature=0.1), parameter-free

    key = jax.random.PRNGKey(0)
    k1, k2 = jax.random.split(key)
    student_output = jax.random.normal(k1, (NCROPS * N, D), dtype=jnp.float32)
    teacher_output = jax.random.normal(k2, (2 * N, D), dtype=jnp.float32)

    loss = dino_neg_loss(student_output, teacher_output,
                         ncrops=NCROPS, temperature=TEMPERATURE)
    jax.block_until_ready(loss)

    ref = dino_neg_loss_ref(student_output, teacher_output,
                            ncrops=NCROPS, temperature=TEMPERATURE)
    assert jnp.allclose(loss, ref, rtol=1e-5, atol=1e-5), (loss, ref)

    print("KERNEL_OK")
</pallas_src>

<mosaic_0001>
module attributes {stable_mosaic.version = 11 : i64} {
  func.func @_dino_neg_loss_kernel(%arg0: i32, %arg1: memref<8x128xf32, #tpu.memory_space<vmem>>, %arg2: memref<16x128xf32, #tpu.memory_space<vmem>>, %arg3: memref<1x8x128xf32, #tpu.memory_space<vmem>>) attributes {dimension_semantics = [#tpu.dimension_semantics<parallel>], iteration_bounds = array<i64: 4>, scalar_prefetch = 0 : i64, scratch_operands = 0 : i64, tpu.core_type = #tpu.core_type<tc>, window_params = [{transform_indices = @transform_0, window_bounds = array<i64: 8, 128>}, {pipeline_mode = #tpu.pipeline_mode<synchronous>, transform_indices = @transform_1, window_bounds = array<i64: 16, 128>}, {transform_indices = @transform_2, window_bounds = array<i64: 1, 8, 128>}]} {
    %c0 = arith.constant 0 : index
    %c0_0 = arith.constant 0 : index
    %0 = vector.load %arg1[%c0, %c0_0] : memref<8x128xf32, #tpu.memory_space<vmem>>, vector<8x128xf32>
    %c0_1 = arith.constant 0 : index
    %c0_2 = arith.constant 0 : index
    %1 = vector.load %arg2[%c0_1, %c0_2] : memref<16x128xf32, #tpu.memory_space<vmem>>, vector<16x128xf32>
    %cst = arith.constant dense<0.000000e+00> : vector<8x16xf32>
    %2 = tpu.matmul %0, %1, %cst {dimension_numbers = #tpu.dot_dimension_numbers<[1], [1], [0], [0], [0, 0, 1, 0], [], []>} : vector<8x128xf32>, vector<16x128xf32>, vector<8x16xf32> -> vector<8x16xf32>
    %cst_3 = arith.constant 1.000000e+01 : f32
    %3 = vector.broadcast %cst_3 : f32 to vector<8x16xf32>
    %4 = arith.mulf %2, %3 : vector<8x16xf32>
    %c0_i32 = arith.constant 0 : i32
    %5 = arith.cmpi ne, %arg0, %c0_i32 : i32
    %6 = arith.extui %5 : i1 to i32
    %7 = arith.sitofp %6 : i32 to f32
    %c1_i32 = arith.constant 1 : i32
    %8 = arith.cmpi ne, %arg0, %c1_i32 : i32
    %9 = arith.extui %8 : i1 to i32
    %10 = arith.sitofp %9 : i32 to f32
    %11 = vector.extract_strided_slice %4 {offsets = [0, 0], sizes = [8, 8], strides = [1, 1]} : vector<8x16xf32> to vector<8x8xf32>
    %cst_4 = arith.constant dense<0xFF800000> : vector<8xf32>
    %12 = vector.multi_reduction <maximumf>, %11, %cst_4 [1] : vector<8x8xf32> to vector<8xf32>
    %13 = vector.shape_cast %12 : vector<8xf32> to vector<8x1xf32>
    %14 = vector.broadcast %13 : vector<8x1xf32> to vector<8x8xf32>
    %15 = arith.subf %11, %14 : vector<8x8xf32>
    %16 = math.exp %15 : vector<8x8xf32>
    %cst_5 = arith.constant dense<0.000000e+00> : vector<8xf32>
    %17 = vector.multi_reduction <add>, %16, %cst_5 [1] : vector<8x8xf32> to vector<8xf32>
    %18 = vector.shape_cast %17 : vector<8xf32> to vector<8x1xf32>
    %19 = math.log %18 : vector<8x1xf32>
    %20 = arith.addf %13, %19 : vector<8x1xf32>
    %21 = vector.extract_strided_slice %1 {offsets = [0, 0], sizes = [8, 128], strides = [1, 1]} : vector<16x128xf32> to vector<8x128xf32>
    %22 = arith.mulf %0, %21 : vector<8x128xf32>
    %cst_6 = arith.constant dense<0.000000e+00> : vector<8xf32>
    %23 = vector.multi_reduction <add>, %22, %cst_6 [1] : vector<8x128xf32> to vector<8xf32>
    %24 = vector.shape_cast %23 : vector<8xf32> to vector<8x1xf32>
    %cst_7 = arith.constant 1.000000e+01 : f32
    %25 = vector.broadcast %cst_7 : f32 to vector<8x1xf32>
    %26 = arith.mulf %24, %25 : vector<8x1xf32>
    %27 = arith.subf %20, %26 : vector<8x1xf32>
    %28 = vector.shape_cast %27 : vector<8x1xf32> to vector<1x8x1xf32>
    %cst_8 = arith.constant dense<0.000000e+00> : vector<1xf32>
    %29 = vector.multi_reduction <add>, %28, %cst_8 [1, 2] : vector<1x8x1xf32> to vector<1xf32>
    %30 = vector.shape_cast %29 : vector<1xf32> to vector<1x1x1xf32>
    %31 = vector.extract %30[0, 0, 0] : f32 from vector<1x1x1xf32>
    %cst_9 = arith.constant 8.000000e+00 : f32
    %32 = arith.divf %31, %cst_9 : f32
    %33 = arith.mulf %7, %32 : f32
    %34 = vector.extract_strided_slice %4 {offsets = [0, 8], sizes = [8, 8], strides = [1, 1]} : vector<8x16xf32> to vector<8x8xf32>
    %cst_10 = arith.constant dense<0xFF800000> : vector<8xf32>
    %35 = vector.multi_reduction <maximumf>, %34, %cst_10 [1] : vector<8x8xf32> to vector<8xf32>
    %36 = vector.shape_cast %35 : vector<8xf32> to vector<8x1xf32>
    %37 = vector.broadcast %36 : vector<8x1xf32> to vector<8x8xf32>
    %38 = arith.subf %34, %37 : vector<8x8xf32>
    %39 = math.exp %38 : vector<8x8xf32>
    %cst_11 = arith.constant dense<0.000000e+00> : vector<8xf32>
    %40 = vector.multi_reduction <add>, %39, %cst_11 [1] : vector<8x8xf32> to vector<8xf32>
    %41 = vector.shape_cast %40 : vector<8xf32> to vector<8x1xf32>
    %42 = math.log %41 : vector<8x1xf32>
    %43 = arith.addf %36, %42 : vector<8x1xf32>
    %44 = vector.extract_strided_slice %1 {offsets = [8, 0], sizes = [8, 128], strides = [1, 1]} : vector<16x128xf32> to vector<8x128xf32>
    %45 = arith.mulf %0, %44 : vector<8x128xf32>
    %cst_12 = arith.constant dense<0.000000e+00> : vector<8xf32>
    %46 = vector.multi_reduction <add>, %45, %cst_12 [1] : vector<8x128xf32> to vector<8xf32>
    %47 = vector.shape_cast %46 : vector<8xf32> to vector<8x1xf32>
    %cst_13 = arith.constant 1.000000e+01 : f32
    %48 = vector.broadcast %cst_13 : f32 to vector<8x1xf32>
    %49 = arith.mulf %47, %48 : vector<8x1xf32>
    %50 = arith.subf %43, %49 : vector<8x1xf32>
    %51 = vector.shape_cast %50 : vector<8x1xf32> to vector<1x8x1xf32>
    %cst_14 = arith.constant dense<0.000000e+00> : vector<1xf32>
    %52 = vector.multi_reduction <add>, %51, %cst_14 [1, 2] : vector<1x8x1xf32> to vector<1xf32>
    %53 = vector.shape_cast %52 : vector<1xf32> to vector<1x1x1xf32>
    %54 = vector.extract %53[0, 0, 0] : f32 from vector<1x1x1xf32>
    %cst_15 = arith.constant 8.000000e+00 : f32
    %55 = arith.divf %54, %cst_15 : f32
    %56 = arith.mulf %10, %55 : f32
    %57 = arith.addf %33, %56 : f32
    %58 = vector.broadcast %57 : f32 to vector<1x8x128xf32>
    %c0_16 = arith.constant 0 : index
    %c0_17 = arith.constant 0 : index
    %c0_18 = arith.constant 0 : index
    %59 = vector.load %arg3[%c0_16, %c0_17, %c0_18] : memref<1x8x128xf32, #tpu.memory_space<vmem>>, vector<1x8x128xf32>
    tpu.vector_store %arg3[%c0_16, %c0_17, %c0_18], %58 {strides = array<i32>} : memref<1x8x128xf32, #tpu.memory_space<vmem>>, vector<1x8x128xf32>,
    return
  }
  func.func @transform_0(%arg0: i32) -> (i32, i32) {
    %c0_i32 = arith.constant 0 : i32
    %c0_i32_0 = arith.constant 0 : i32
    return %arg0, %c0_i32 : i32, i32
  }
  func.func @transform_1(%arg0: i32) -> (i32, i32) {
    %c0_i32 = arith.constant 0 : i32
    %c0_i32_0 = arith.constant 0 : i32
    %c0_i32_1 = arith.constant 0 : i32
    return %c0_i32, %c0_i32_0 : i32, i32
  }
  func.func @transform_2(%arg0: i32) -> (i32, i32, i32) {
    %c0_i32 = arith.constant 0 : i32
    %c0_i32_0 = arith.constant 0 : i32
    %c0_i32_1 = arith.constant 0 : i32
    return %arg0, %c0_i32, %c0_i32_0 : i32, i32, i32
  }
}

</mosaic_0001>

<llo_original>
// kernel: tpu_custom_call.1
$region0: #{tpu_custom_call.1}
  #allocation0 [shape = 'u32[]', space=smem, size = 0x4, offset = 0x4, fixed_abs, tag = 'smem constant byte address 0x4 - core index']
  #allocation1 [shape = 'u32[144,128]{1,0:T(1,128)}', space=vmem, size = 0x12000, scoped, tag = 'internal scratch']
  %s0 = inlined_call_operand.hbm [shape: f32[32,128], index: 0, kind: input, shape index: {}]
  %s1 = inlined_call_operand.hbm [shape: f32[16,128], index: 1, kind: input, shape index: {}]
  %s2 = inlined_call_operand.hbm [shape: f32[4,8,128], index: 2, kind: output, shape index: {}]
  %s3 = sld [smem:[#allocation0]]
  $region49: #{tpu_custom_call.1} parent=0
    _
  %s5 = ssub.s32 1, %s3
  %s6 = scalar_select 0, %s5, %s3
  $region1: #{tpu_custom_call.1} parent=0
    #allocation2 [shape = 'u8[8192]{0}', space=vmem, size = 0x2000, scoped, tag = 'input window, operand 0']
    #allocation3 [shape = 's32[2]{0}', space=sflag, size = 0x8, scoped, tag = 'scoped memory for tpu_custom_call.1']
    #allocation4 [shape = 's32[2]{0}', space=sflag, size = 0x8, scoped, tag = 'scoped memory for tpu_custom_call.1']
    #allocation5 [shape = 'u8[8192]{0}', space=vmem, size = 0x2000, scoped, tag = 'input window, operand 1, single buffered']
    #allocation6 [shape = 's32[1]{0}', space=sflag, size = 0x4, scoped, tag = 'scoped memory for tpu_custom_call.1']
    #allocation7 [shape = 'u8[8192]{0}', space=vmem, size = 0x2000, scoped, tag = 'output window, operand 0']
    %7 = vsyncpa [#allocation3], 0
    %s8 = scalar_lea.sflag [#allocation3], 1
    %9 = vsyncpa %s8, 0
    %10 = vsyncpa [#allocation6], 0
    %11 = vsyncpa [#allocation4], 0
    %s12 = scalar_lea.sflag [#allocation4], 1
    %13 = vsyncpa %s12, 0
    loop: start=0, step=1, limit=6
    $region2: #{tpu_custom_call.1} parent=1 // loop_pre_header
      _
    $region3: #{tpu_custom_call.1} parent=1 // loop_header
      %s15 = sphi 0, %s19
      %p16 = scmp.ge.s32.totalorder %s15, 6
      %s25 = sphi 0, %s27
      %s28 = sphi 0, %s25
      %s29 = sphi 0, %s28
      %s45 = sphi 0, %s29
      %s49 = sphi 0, %s49
      %s51 = sphi 0, %s49
      %s52 = sphi 0, %s51
      %s66 = sphi 0, %s52
      %s72 = sphi 0, %s74
      %s75 = sphi 0, %s72
      %s76 = sphi 0, %s75
      %s92 = sphi 0, %s76
    $region4: #{tpu_custom_call.1} parent=1 // loop_header_branch
      %18 = sbr.rel (%p16) target = $region8
    $region5: #{tpu_custom_call.1} parent=1 // loop_body
      %s20 = ssub.s32 %s15, 1
      %s21 = ssub.s32 %s15, 2
      %s22 = sadd.s32 %s15, 1
      %s23 = ssub.s32 %s15, %s22
      %p24 = scmp.eq.s32.totalorder %s23, 0
      %s26 = sadd.s32 %s25, 1
      %s27 = scalar_select %p24, %s25, %s26
      %p30 = pneg %p24
      %p31 = scmp.eq.s32.totalorder %s15, 3
      %p32 = por %p30, %p31
      %p33 = scmp.ne.s32.totalorder %s25, %s28
      %p34 = scmp.eq.s32.totalorder %s15, 0
      %p35 = por %p33, %p34
      %p36 = scmp.ne.s32.totalorder %s25, %s28
      %p37 = scmp.eq.s32.totalorder %s20, 3
      %p38 = por %p36, %p37
      %p39 = scmp.ne.s32.totalorder %s28, %s29
      %p40 = scmp.eq.s32.totalorder %s20, 0
      %p41 = por %p39, %p40
      %p42 = scmp.ne.s32.totalorder %s28, %s29
      %p43 = scmp.eq.s32.totalorder %s21, 3
      %p44 = por %p42, %p43
      %p46 = scmp.ne.s32.totalorder %s29, %s45
      %p47 = scmp.eq.s32.totalorder %s21, 0
      %p48 = por %p46, %p47
      %s50 = sadd.s32 %s49, 1
      %p53 = scmp.eq.s32.totalorder %s15, 3
      %p54 = scmp.ne.s32.totalorder %s49, %s51
      %p55 = scmp.eq.s32.totalorder %s15, 0
      %p56 = por %p54, %p55
      %p57 = scmp.ne.s32.totalorder %s49, %s51
      %p58 = scmp.eq.s32.totalorder %s20, 3
      %p59 = por %p57, %p58
      %p60 = scmp.ne.s32.totalorder %s51, %s52
      %p61 = scmp.eq.s32.totalorder %s20, 0
      %p62 = por %p60, %p61
      %p63 = scmp.ne.s32.totalorder %s51, %s52
      %p64 = scmp.eq.s32.totalorder %s21, 3
      %p65 = por %p63, %p64
      %p67 = scmp.ne.s32.totalorder %s52, %s66
      %p68 = scmp.eq.s32.totalorder %s21, 0
      %p69 = por %p67, %p68
      %s70 = ssub.s32 %s15, %s22
      %p71 = scmp.eq.s32.totalorder %s70, 0
      %s73 = sadd.s32 %s72, 1
      %s74 = scalar_select %p71, %s72, %s73
      %p77 = pneg %p71
      %p78 = scmp.eq.s32.totalorder %s15, 3
      %p79 = por %p77, %p78
      %p80 = scmp.ne.s32.totalorder %s72, %s75
      %p81 = scmp.eq.s32.totalorder %s15, 0
      %p82 = por %p80, %p81
      %p83 = scmp.ne.s32.totalorder %s72, %s75
      %p84 = scmp.eq.s32.totalorder %s20, 3
      %p85 = por %p83, %p84
      %p86 = scmp.ne.s32.totalorder %s75, %s76
      %p87 = scmp.eq.s32.totalorder %s20, 0
      %p88 = por %p86, %p87
      %p89 = scmp.ne.s32.totalorder %s75, %s76
      %p90 = scmp.eq.s32.totalorder %s21, 3
      %p91 = por %p89, %p90
      %p93 = scmp.ne.s32.totalorder %s76, %s92
      %p94 = scmp.eq.s32.totalorder %s21, 0
      %p95 = por %p93, %p94
      %p96 = scmp.le.s32.totalorder 1, %s15
      %p97 = scmp.lt.s32.totalorder %s15, 5
      %p98 = pnand %p96, %p97
      %p99 = pneg %p98
      // Predicated region
      $region9: #{tpu_custom_call.1} parent=5 // pred_check
        _
      $region10: #{tpu_custom_call.1} parent=5 // pred_check_branch
        %101 = sbr.rel (%p98) target = $region12
      $region11: #{tpu_custom_call.1} parent=5 // pred_region
        %s102 = ssub.s32 %s15, 1
        // Predicated region
        $region13: #{tpu_custom_call.1} parent=11 // pred_check
          %p103 = pneg %p62
        $region14: #{tpu_custom_call.1} parent=11 // pred_check_branch
          %105 = sbr.rel (%p103) target = $region16
        $region15: #{tpu_custom_call.1} parent=11 // pred_region
          %s107 = ssub.s32 256, 256
          %108 = vsyncadd [#allocation6], %s107
          %s109 = sshll.u32 [#allocation5], 4
          %s110 = int_to_ptr.vmem [resolvable:$true] %s109
          %115 = dma.hbm_to_vmem [thread:$0]  %s1, 256, %s110, [#allocation6], 128, 128, 8
        $region16: #{tpu_custom_call.1} parent=11 // pred_fallthru
          _
      $region12: #{tpu_custom_call.1} parent=5 // pred_fallthru
        _
      %p116 = scmp.lt.s32.totalorder %s15, 4
      // Predicated region
      $region17: #{tpu_custom_call.1} parent=5 // pred_check
        %p117 = pneg %p116
      $region18: #{tpu_custom_call.1} parent=5 // pred_check_branch
        %119 = sbr.rel (%p117) target = $region20
      $region19: #{tpu_custom_call.1} parent=5 // pred_region
        // Predicated region
        $region21: #{tpu_custom_call.1} parent=19 // pred_check
          %p120 = pneg %p35
        $region22: #{tpu_custom_call.1} parent=19 // pred_check_branch
          %122 = sbr.rel (%p120) target = $region24
        $region23: #{tpu_custom_call.1} parent=19 // pred_region
          %s123 = sand.u32 %s25, 1
          %s124 = scalar_lea.sflag [#allocation3], %s123
          %s125 = sand.u32 %s25, 1
          %s126 = smul.addr %s125, 8
          %s127 = scalar_lea.vmem [#allocation2], %s126
          %s129 = ssub.s32 128, 128
          %130 = vsyncadd %s124, %s129
          %s131 = smul.addr %s15, 128
          %s132 = scalar_lea.hbm %s0, %s131
          %s134 = sshll.u32 %s127, 4
          %s135 = int_to_ptr.vmem [resolvable:$true] %s134
          %137 = dma.hbm_to_vmem [thread:$0]  %s132, 128, %s135, %s124
        $region24: #{tpu_custom_call.1} parent=19 // pred_fallthru
          _
      $region20: #{tpu_custom_call.1} parent=5 // pred_fallthru
        _
      %p138 = scmp.le.s32.totalorder 1, %s15
      %p139 = scmp.lt.s32.totalorder %s15, 5
      %p140 = pnand %p138, %p139
      %p141 = pneg %p140
      // Predicated region
      $region25: #{tpu_custom_call.1} parent=5 // pred_check
        _
      $region26: #{tpu_custom_call.1} parent=5 // pred_check_branch
        %143 = sbr.rel (%p140) target = $region28
      $region27: #{tpu_custom_call.1} parent=5 // pred_region
        %s144 = ssub.s32 %s15, 1
        %s145 = sand.u32 %s28, 1
        %s146 = scalar_lea.sflag [#allocation3], %s145
        %s147 = sand.u32 %s28, 1
        %s148 = smul.addr %s147, 8
        %s149 = scalar_lea.vmem [#allocation2], %s148
        // Predicated region
        $region29: #{tpu_custom_call.1} parent=27 // pred_check
          %p150 = pneg %p41
        $region30: #{tpu_custom_call.1} parent=27 // pred_check_branch
          %152 = sbr.rel (%p150) target = $region32
        $region31: #{tpu_custom_call.1} parent=27 // pred_region
          %153 = dma.done %s146, 128
        $region32: #{tpu_custom_call.1} parent=27 // pred_fallthru
          _
        // Predicated region
        $region33: #{tpu_custom_call.1} parent=27 // pred_check
          %p154 = pneg %p62
        $region34: #{tpu_custom_call.1} parent=27 // pred_check_branch
          %156 = sbr.rel (%p154) target = $region36
        $region35: #{tpu_custom_call.1} parent=27 // pred_region
          %157 = dma.done [#allocation6], 256
        $region36: #{tpu_custom_call.1} parent=27 // pred_fallthru
          _
        %s158 = sand.u32 %s28, 1
        %s159 = scalar_lea.sflag [#allocation3], %s158
        %s160 = sand.u32 %s28, 1
        %s161 = smul.addr %s160, 8
        %s162 = scalar_lea.vmem [#allocation2], %s161
        %p163 = pneg %p41
        %p164 = pneg %p38
        %p165 = pneg %p62
        %p166 = pneg %p59
        %p167 = pneg %p88
        %p168 = pneg %p85
        %s169 = sand.u32 %s75, 1
        %s170 = scalar_lea.sflag [#allocation4], %s169
        %s171 = sand.u32 %s75, 1
        %s172 = smul.addr %s171, 8
        %s173 = scalar_lea.vmem [#allocation7], %s172
        %v174 = vld [vmem:[%s149] sm:$0xff]
        %v175 = vld [vmem:[#allocation5] sm:$0xff]
        %v176 = vld [vmem:[#allocation5 + $0x8] sm:$0xff]
        %177 = vmatprep.subr.mxu0 0.0
        %178 = vmatpush1.xpose.msra.mxu0 %v175
        %179 = vmatprep.subr.mxu0 0.0
        %180 = vmatpush1.xpose.msra.mxu0 %v176
        %181 = vmatprep.subr.mxu0 0.0
        %182 = vmatpush1.xpose.msra.mxu0 0.0
        %183 = vmatprep.subr.mxu0 0.0
        %184 = vmatpush1.xpose.msra.mxu0 0.0
        %185 = vmatprep.subr.mxu0 0.0
        %186 = vmatpush1.xpose.msra.mxu0 0.0
        %187 = vmatprep.subr.mxu0 0.0
        %188 = vmatpush1.xpose.msra.mxu0 0.0
        %189 = vmatprep.subr.mxu0 0.0
        %190 = vmatpush1.xpose.msra.mxu0 0.0
        %191 = vmatprep.subr.mxu0 0.0
        %192 = vmatpush1.xpose.msra.mxu0 0.0
        %193 = vmatprep.subr.mxu0 0.0
        %194 = vmatpush1.xpose.msra.mxu0 0.0
        %195 = vmatprep.subr.mxu0 0.0
        %196 = vmatpush1.xpose.msra.mxu0 0.0
        %197 = vmatprep.subr.mxu0 0.0
        %198 = vmatpush1.xpose.msra.mxu0 0.0
        %199 = vmatprep.subr.mxu0 0.0
        %200 = vmatpush1.xpose.msra.mxu0 0.0
        %201 = vmatprep.subr.mxu0 0.0
        %202 = vmatpush1.xpose.msra.mxu0 0.0
        %203 = vmatprep.subr.mxu0 0.0
        %204 = vmatpush1.xpose.msra.mxu0 0.0
        %205 = vmatprep.subr.mxu0 0.0
        %206 = vmatpush1.xpose.msra.mxu0 0.0
        %207 = vmatprep.subr.mxu0 0.0
        %208 = vmatpush1.xpose.msra.mxu0 0.0
        %209 = vmatprep.subr.mxu0 0.0
        %210 = vmatpush1.xpose.msra.mxu0 0.0
        %211 = vmatprep.subr.mxu0 0.0
        %212 = vmatpush1.xpose.msra.mxu0 0.0
        %213 = vmatprep.subr.mxu0 0.0
        %214 = vmatpush1.xpose.msra.mxu0 0.0
        %215 = vmatprep.subr.mxu0 0.0
        %216 = vmatpush1.xpose.msra.mxu0 0.0
        %217 = vmatprep.subr.mxu0 0.0
        %218 = vmatpush1.xpose.msra.mxu0 0.0
        %219 = vmatprep.subr.mxu0 0.0
        %220 = vmatpush1.xpose.msra.mxu0 0.0
        %221 = vmatprep.subr.mxu0 0.0
        %222 = vmatpush1.xpose.msra.mxu0 0.0
        %223 = vmatprep.subr.mxu0 0.0
        %224 = vmatpush1.xpose.msra.mxu0 0.0
        %225 = vmatprep.subr.mxu0 0.0
        %226 = vmatpush1.xpose.msra.mxu0 0.0
        %227 = vmatprep.subr.mxu0 0.0
        %228 = vmatpush1.xpose.msra.mxu0 0.0
        %229 = vmatprep.subr.mxu0 0.0
        %230 = vmatpush1.xpose.msra.mxu0 0.0
        %231 = vmatprep.subr.mxu0 0.0
        %232 = vmatpush1.xpose.msra.mxu0 0.0
        %233 = vmatprep.subr.mxu0 0.0
        %234 = vmatpush1.xpose.msra.mxu0 0.0
        %235 = vmatprep.subr.mxu0 0.0
        %236 = vmatpush1.xpose.msra.mxu0 0.0
        %237 = vmatprep.subr.mxu0 0.0
        %238 = vmatpush1.xpose.msra.mxu0 0.0
        %239 = vmatprep.subr.mxu0 0.0
        %240 = vmatpush1.xpose.msra.mxu0 0.0
        %241 = vmatprep.mubr.f32.mxu0 0.0
        %242 = vmatmul.mubr.f32.gmra.mrb[0].mxu0 %v174
        %v243 = vpop.f32.mrb[0].mxu0
        %v244 = vadd.f32 0.0, %v243
        %v245 = vpop.f32.mrb[0].mxu0
        %246 = vdwg.mxu0
        %v247 = vmul.f32 %v244, 10.0
        %p248 = scmp.ne.s32.totalorder %s20, 0
        %s249 = scalar_select %p248, 1, 0
        %s250 = scvt.s32.f32 %s249
        %p251 = scmp.ne.s32.totalorder %s20, 1
        %s252 = scalar_select %p251, 1, 0
        %s253 = scvt.s32.f32 %s252
        %vm254 = vcmask 64512
        %v255 = vsel %vm254, %v247, -inf
        %256 = vmax.xlane.f32.xlu0 %v255
        %v257 = vpop.xlane.xlu0 %256
        %v258 = vsub.f32 %v247, %v257
        %v259 = vmul.f32 %v258, 1.442695
        %v260 = vpow.pop %v259
        %v261 = vsel %vm254, %v260, 0.0
        %262 = vadd.xlane.f32.xlu0 %v261
        %v263 = vpop.xlane.xlu0 %262
        %v264 = vlog2.pop %v263
        %v265 = vmul.f32 %v264, 0.6931472
        %v266 = vadd.f32 %v257, %v265
        %v267 = vmul.f32 %v174, %v175
        %268 = vadd.xlane.f32.xlu0 %v267
        %v269 = vpop.xlane.xlu0 %268
        %v270 = vmul.f32 %v269, 10.0
        %v271 = vsub.f32 %v266, %v270
        %vm272 = vcmask 7168
        %v273 = vsel %vm272, %v271, 0.0
        %274 = vadd.xlane.f32.xlu0 %v273
        %v275 = vpop.xlane.xlu0 %274
        %v276 = vrot.slane %v275, 4
        %v277 = vadd.f32 %v275, %v276
        %v278 = vrot.slane %v277, 2
        %v279 = vadd.f32 %v277, %v278
        %v280 = vrot.slane %v279, 1
        %v281 = vadd.f32 %v279, %v280
        %s282 = vtos %v281
        %v283 = vrcp.pop 8.0
        %s284 = vtos %v283
        %s285 = smul.f32 %s282, %s284
        %s286 = smul.f32 %s250, %s285
        %vm287 = vcmask 130112
        %v288 = vsel %vm287, %v247, -inf
        %289 = vmax.xlane.f32.xlu0 %v288
        %v290 = vpop.xlane.xlu0 %289
        %v291 = vsub.f32 %v247, %v290
        %v292 = vmul.f32 %v291, 1.442695
        %v293 = vpow.pop %v292
        %295 = vrot.lane.b32.xlu0 %v293, 120
        %v296 = vpop.permute.xlu0 %295
        %v298 = vsel %vm254, %v296, 0.0
        %299 = vadd.xlane.f32.xlu0 %v298
        %v300 = vpop.xlane.xlu0 %299
        %v301 = vlog2.pop %v300
        %v302 = vmul.f32 %v301, 0.6931472
        %v303 = vadd.f32 %v290, %v302
        %v304 = vmul.f32 %v174, %v176
        %305 = vadd.xlane.f32.xlu0 %v304
        %v306 = vpop.xlane.xlu0 %305
        %v307 = vmul.f32 %v306, 10.0
        %v308 = vsub.f32 %v303, %v307
        %v309 = vsel %vm272, %v308, 0.0
        %310 = vadd.xlane.f32.xlu0 %v309
        %v311 = vpop.xlane.xlu0 %310
        %v312 = vrot.slane %v311, 4
        %v313 = vadd.f32 %v311, %v312
        %v314 = vrot.slane %v313, 2
        %v315 = vadd.f32 %v313, %v314
        %v316 = vrot.slane %v315, 1
        %v317 = vadd.f32 %v315, %v316
        %s318 = vtos %v317
        %v319 = vrcp.pop 8.0
        %s320 = vtos %v319
        %s321 = smul.f32 %s318, %s320
        %s322 = smul.f32 %s253, %s321
        %s323 = sadd.f32 %s286, %s322
        %v324 = vstv %s323
        %325 = vst [vmem:[%s173] sm:$0xff] %v324
        %s326 = sand.u32 %s75, 1
        %s327 = scalar_lea.sflag [#allocation4], %s326
        %s328 = sand.u32 %s75, 1
        %s329 = smul.addr %s328, 8
        %s330 = scalar_lea.vmem [#allocation7], %s329
        // Predicated region
        $region37: #{tpu_custom_call.1} parent=27 // pred_check
          %p331 = pneg %p85
        $region38: #{tpu_custom_call.1} parent=27 // pred_check_branch
          %333 = sbr.rel (%p331) target = $region40
        $region39: #{tpu_custom_call.1} parent=27 // pred_region
          %s335 = ssub.s32 128, 128
          %336 = vsyncadd %s327, %s335
          %s337 = smul.addr %s20, 128
          %s338 = scalar_lea.hbm %s2, %s337
          %s340 = sshll.u32 %s330, 4
          %s341 = int_to_ptr.vmem [resolvable:$true] %s340
          %343 = dma.vmem_to_hbm [thread:$0]  %s341, 128, %s338, %s327
        $region40: #{tpu_custom_call.1} parent=27 // pred_fallthru
          _
      $region28: #{tpu_custom_call.1} parent=5 // pred_fallthru
        _
      %p344 = scmp.le.s32.totalorder 2, %s15
      // Predicated region
      $region41: #{tpu_custom_call.1} parent=5 // pred_check
        %p345 = pneg %p344
      $region42: #{tpu_custom_call.1} parent=5 // pred_check_branch
        %347 = sbr.rel (%p345) target = $region44
      $region43: #{tpu_custom_call.1} parent=5 // pred_region
        %s348 = ssub.s32 %s15, 2
        // Predicated region
        $region45: #{tpu_custom_call.1} parent=43 // pred_check
          %p349 = pneg %p91
        $region46: #{tpu_custom_call.1} parent=43 // pred_check_branch
          %351 = sbr.rel (%p349) target = $region48
        $region47: #{tpu_custom_call.1} parent=43 // pred_region
          %s352 = sand.u32 %s76, 1
          %s353 = scalar_lea.sflag [#allocation4], %s352
          %s354 = sand.u32 %s76, 1
          %s355 = smul.addr %s354, 8
          %s356 = scalar_lea.vmem [#allocation7], %s355
          %357 = dma.done %s353, 128
        $region48: #{tpu_custom_call.1} parent=43 // pred_fallthru
          _
      $region44: #{tpu_custom_call.1} parent=5 // pred_fallthru
        _
    $region6: #{tpu_custom_call.1} parent=1 // loop_footer
      %s19 = sadd.s32 1, %s15
    $region7: #{tpu_custom_call.1} parent=1 // loop_footer_branch
      %14 = sbr.rel target = $region3
    $region8: #{tpu_custom_call.1} parent=1 // loop_exit
      _
    %358 = vsyncpa [#allocation3], 1
    %s359 = scalar_lea.sflag [#allocation3], 1
    %360 = vsyncpa %s359, 1
    %361 = vsyncpa [#allocation6], 1
    %362 = vsyncpa [#allocation4], 1
    %s363 = scalar_lea.sflag [#allocation4], 1
    %364 = vsyncpa %s363, 1

</llo_original>
